<compile_context>
chip_gen: v7x
topology: tpu7x:2x2x1
jax: 0.10.0
libtpu: 0.0.40
codegen_flags: <defaults>
</compile_context>

<pallas_src>
import functools

import jax
import jax.numpy as jnp
from jax import lax
from jax.experimental import pallas as pl
from jax.experimental.pallas import tpu as pltpu


# ----------------------------------------------------------------------------
# sizing helpers
# ----------------------------------------------------------------------------

def _vmem_limit_bytes() -> int:
    """~3/4 of the device's VMEM (leaves headroom for compiler scratch),
    clamped to 112 MiB. Falls back to a v7x-safe 48 MiB if the query fails."""
    cap = 64 << 20                       # conservative default (v7x per-core)
    try:
        info = pltpu.get_tpu_info()
        cap = int(getattr(info, "vmem_capacity_bytes", 0)) or cap
    except Exception:
        pass
    cap = max(cap, 32 << 20)
    return min((3 * cap) // 4, 112 << 20)


def _largest_aligned_divisor(total: int, align: int, cap: int):
    """Largest d <= cap with d % align == 0 and total % d == 0, else None."""
    cap = min(cap, total)
    d = (cap // align) * align
    while d >= align:
        if total % d == 0:
            return d
        d -= align
    return None


def _largest_divisor_leq(total: int, cap: int) -> int:
    """Largest divisor of `total` that is <= cap (at least 1)."""
    cap = max(1, min(cap, total))
    for d in range(cap, 0, -1):
        if total % d == 0:
            return d
    return 1


def _choose_c_blk(C: int, c_cap: int, itemsize: int):
    """Channel block size: an aligned divisor of C (or C itself) no larger
    than c_cap. Prefers dtype-packed sublane alignment and >= 2 channel blocks
    so the 'parallel' channel axis shards across both v7x TensorCores."""
    if c_cap < 1:
        return None
    pref = max(8, 32 // max(1, itemsize))          # 8 f32 / 16 bf16 / 32 int8
    for align in (pref, 8):
        if C >= 2 * align and c_cap >= align:
            d = _largest_aligned_divisor(C, align, min(c_cap, C // 2))
            if d is not None:
                return d
    for align in (pref, 8):
        if c_cap >= align:
            d = _largest_aligned_divisor(C, align, c_cap)
            if d is not None:
                return d
    return C if C <= c_cap else None               # full extent is always legal


# ----------------------------------------------------------------------------
# kernels
# ----------------------------------------------------------------------------

def _bn_fused_kernel(x_ref, w_ref, b_ref, o_ref, mean_ref, var_ref, *,
                     inv_m, eps, fuse_relu):
    """Single pass per channel-block: the whole (N, c_blk, HW) slab is VMEM
    resident, so stats + normalize need only one HBM read of x."""
    x = x_ref[...].astype(jnp.float32)                              # (N,c,HW)
    mean = jnp.sum(jnp.sum(x, axis=2, keepdims=True),
                   axis=0, keepdims=True) * inv_m                   # (1,c,1)
    centered = x - mean
    var = jnp.sum(jnp.sum(centered * centered, axis=2, keepdims=True),
                  axis=0, keepdims=True) * inv_m                    # biased
    scale = w_ref[...] * lax.rsqrt(var + eps)                       # (1,c,1)
    y = centered * scale + b_ref[...]
    if fuse_relu:
        y = jnp.maximum(y, 0.0)
    o_ref[...] = y.astype(o_ref.dtype)
    mean_ref[...] = mean
    var_ref[...] = var


def _bn_stats_kernel(x_ref, mean_ref, m2_ref, *, cnt_blk, inv_m):
    """Fallback pass 1: per-channel running mean / centered M2 combined with
    Chan's parallel-variance update, accumulated directly into the resident
    output blocks across the (N, HW) reduction grid axes."""
    ni = pl.program_id(1)
    hi = pl.program_id(2)
    num_hw = pl.num_programs(2)
    step = ni * num_hw + hi
    last = pl.num_programs(1) * num_hw - 1

    x = x_ref[...].astype(jnp.float32)                          # (n,c,hw)
    sum_b = jnp.sum(jnp.sum(x, axis=2, keepdims=True), axis=0, keepdims=True)
    mean_b = sum_b * (1.0 / cnt_blk)                            # (1,c,1)
    cb = x - mean_b
    m2_b = jnp.sum(jnp.sum(cb * cb, axis=2, keepdims=True),
                   axis=0, keepdims=True)

    @pl.when(step == 0)
    def _():
        mean_ref[...] = mean_b
        m2_ref[...] = m2_b

    @pl.when(step != 0)
    def _():
        cnt_a = step.astype(jnp.float32) * cnt_blk
        tot = cnt_a + cnt_blk
        delta = mean_b - mean_ref[...]
        mean_ref[...] = mean_ref[...] + delta * (cnt_blk / tot)
        m2_ref[...] = m2_ref[...] + m2_b + delta * delta * (cnt_a * cnt_blk / tot)

    @pl.when(step == last)
    def _():
        m2_ref[...] = m2_ref[...] * inv_m                       # -> biased var


def _bn_apply_kernel(x_ref, scale_ref, shift_ref, o_ref, *, fuse_relu):
    """Fallback pass 2: y = x * scale + shift (+ReLU). Works for both the
    lane-dense flattened (n_blk, l_blk) blocks and 3-D per-channel blocks."""
    y = x_ref[...].astype(jnp.float32) * scale_ref[...] + shift_ref[...]
    if fuse_relu:
        y = jnp.maximum(y, 0.0)
    o_ref[...] = y.astype(o_ref.dtype)


# ----------------------------------------------------------------------------
# pallas_call wrappers
# ----------------------------------------------------------------------------

def _fused_pass(x3, weight, bias, c_blk, eps, fuse_relu, vmem_limit):
    N, C, HW = x3.shape
    M = N * HW
    itemsize = jnp.dtype(x3.dtype).itemsize
    num_c = C // c_blk
    w3 = weight.reshape(1, C, 1).astype(jnp.float32)
    b3 = bias.reshape(1, C, 1).astype(jnp.float32)

    x_spec = pl.BlockSpec((N, c_blk, HW), lambda ci: (0, ci, 0))
    chan_spec = pl.BlockSpec((1, c_blk, 1), lambda ci: (0, ci, 0))
    kernel = functools.partial(_bn_fused_kernel, inv_m=1.0 / M, eps=eps,
                               fuse_relu=fuse_relu)
    out3, mean3, var3 = pl.pallas_call(
        kernel,
        out_shape=(jax.ShapeDtypeStruct((N, C, HW), x3.dtype),
                   jax.ShapeDtypeStruct((1, C, 1), jnp.float32),
                   jax.ShapeDtypeStruct((1, C, 1), jnp.float32)),
        grid_spec=pltpu.PrefetchScalarGridSpec(
            num_scalar_prefetch=0,
            grid=(num_c,),
            in_specs=[x_spec, chan_spec, chan_spec],
            out_specs=(x_spec, chan_spec, chan_spec)),
        compiler_params=pltpu.CompilerParams(
            dimension_semantics=("parallel",),
            vmem_limit_bytes=vmem_limit),
        cost_estimate=pl.CostEstimate(
            flops=7 * C * M, transcendentals=C,
            bytes_accessed=2 * C * M * itemsize + 12 * C),
    )(x3, w3, b3)
    return out3, mean3.reshape(C), var3.reshape(C)


def _stats_pass(x3, vmem_limit, block_target, itemsize):
    N, C, HW = x3.shape
    M = N * HW
    c_blk = _choose_c_blk(
        C, max(8, block_target // (min(HW, 128) * itemsize)), itemsize) or C
    hw_blk = _largest_aligned_divisor(
        HW, 128, max(128, block_target // (c_blk * itemsize))) or HW
    n_blk = _largest_divisor_leq(
        N, max(1, block_target // (c_blk * hw_blk * itemsize)))

    x_spec = pl.BlockSpec((n_blk, c_blk, hw_blk), lambda ci, ni, hi: (ni, ci, hi))
    chan_spec = pl.BlockSpec((1, c_blk, 1), lambda ci, ni, hi: (0, ci, 0))
    kernel = functools.partial(_bn_stats_kernel,
                               cnt_blk=float(n_blk * hw_blk), inv_m=1.0 / M)
    mean3, var3 = pl.pallas_call(
        kernel,
        out_shape=(jax.ShapeDtypeStruct((1, C, 1), jnp.float32),
                   jax.ShapeDtypeStruct((1, C, 1), jnp.float32)),
        grid_spec=pltpu.PrefetchScalarGridSpec(
            num_scalar_prefetch=0,
            grid=(C // c_blk, N // n_blk, HW // hw_blk),   # reduction axes last
            in_specs=[x_spec],
            out_specs=(chan_spec, chan_spec)),
        compiler_params=pltpu.CompilerParams(
            dimension_semantics=("parallel", "arbitrary", "arbitrary"),
            vmem_limit_bytes=vmem_limit),
        cost_estimate=pl.CostEstimate(
            flops=5 * C * M, transcendentals=0,
            bytes_accessed=C * M * itemsize + 8 * C),
    )(x3)
    return mean3.reshape(C), var3.reshape(C)


def _apply_pass(x3, scale, shift, fuse_relu, vmem_limit, block_target, itemsize):
    N, C, HW = x3.shape
    L = C * HW
    kernel = functools.partial(_bn_apply_kernel, fuse_relu=fuse_relu)
    hard_cap = vmem_limit // 6       # guard: never one block bigger than this

    # Preferred: lane-dense flattened (N, C*HW) view (free reshape in NCHW):
    # unmasked stores + large DMA rows even when HW is 49/196/784.
    l_blk = _largest_aligned_divisor(L, 128, max(128, block_target // itemsize))
    if l_blk is None and L * itemsize <= hard_cap:
        l_blk = L
    if l_blk is not None:
        x2 = x3.reshape(N, L)
        scale_row = jnp.repeat(scale, HW).reshape(1, L)
        shift_row = jnp.repeat(shift, HW).reshape(1, L)
        n_blk = _largest_divisor_leq(N, max(1, block_target // (l_blk * itemsize)))
        x_spec = pl.BlockSpec((n_blk, l_blk), lambda ni, li: (ni, li))
        row_spec = pl.BlockSpec((1, l_blk), lambda ni, li: (0, li))
        out2 = pl.pallas_call(
            kernel,
            out_shape=jax.ShapeDtypeStruct((N, L), x3.dtype),
            grid_spec=pltpu.PrefetchScalarGridSpec(
                num_scalar_prefetch=0,
                grid=(N // n_blk, L // l_blk),
                in_specs=[x_spec, row_spec, row_spec],
                out_specs=x_spec),
            compiler_params=pltpu.CompilerParams(
                dimension_semantics=("parallel", "parallel"),
                vmem_limit_bytes=vmem_limit),
        )(x2, scale_row, shift_row)
        return out2.reshape(N, C, HW)

    # Fallback: 3-D blocks with per-channel scale/shift refs.
    c_blk = _choose_c_blk(
        C, max(8, block_target // (min(HW, 128) * itemsize)), itemsize) or C
    hw_blk = _largest_aligned_divisor(
        HW, 128, max(128, block_target // (c_blk * itemsize))) or HW
    n_blk = _largest_divisor_leq(
        N, max(1, block_target // (c_blk * hw_blk * itemsize)))
    scale3 = scale.reshape(1, C, 1)
    shift3 = shift.reshape(1, C, 1)
    x_spec = pl.BlockSpec((n_blk, c_blk, hw_blk), lambda ci, ni, hi: (ni, ci, hi))
    chan_spec = pl.BlockSpec((1, c_blk, 1), lambda ci, ni, hi: (0, ci, 0))
    out3 = pl.pallas_call(
        kernel,
        out_shape=jax.ShapeDtypeStruct((N, C, HW), x3.dtype),
        grid_spec=pltpu.PrefetchScalarGridSpec(
            num_scalar_prefetch=0,
            grid=(C // c_blk, N // n_blk, HW // hw_blk),
            in_specs=[x_spec, chan_spec, chan_spec],
            out_specs=x_spec),
        compiler_params=pltpu.CompilerParams(
            dimension_semantics=("parallel", "parallel", "parallel"),
            vmem_limit_bytes=vmem_limit),
    )(x3, scale3, shift3)
    return out3


# ----------------------------------------------------------------------------
# public entry point: training-mode BatchNorm2d forward (matches spec module)
# ----------------------------------------------------------------------------

def batchnorm2d_forward(x, weight, bias, running_mean, running_var,
                        num_batches_tracked, *, eps=1e-5, momentum=0.1,
                        fuse_relu=False, unbiased_running_var=False,
                        max_fused_block_bytes=None):
    """x: (N, C, H, W). Returns (out, new_running_mean, new_running_var,
    new_num_batches_tracked). `fuse_relu=True` applies the trailing ReLU in
    the normalize epilogue (for the BN+ReLU pairs in ResNet34)."""
    N, C, H, W = x.shape
    HW = H * W
    M = N * HW
    itemsize = jnp.dtype(x.dtype).itemsize
    vmem_limit = _vmem_limit_bytes()
    # Per-block byte target: ~4-8 MiB depending on available VMEM.
    block_target = max(2 << 20, min(8 << 20, vmem_limit // 10))

    x3 = x.reshape(N, C, HW)        # free reshape, NCHW memory order preserved

    # Fused single-pass path: per-channel cost = double-buffered in + out block
    # (x dtype) plus ~3 f32-sized in-kernel temporaries.
    fused_budget = ((3 * vmem_limit) // 4 if max_fused_block_bytes is None
                    else int(max_fused_block_bytes))
    per_chan_bytes = N * HW * (4 * itemsize + 3 * 4)
    c_cap = fused_budget // per_chan_bytes
    c_blk = _choose_c_blk(C, c_cap, itemsize)

    if c_blk is not None:
        out3, mean_c, var_c = _fused_pass(x3, weight, bias, c_blk, eps,
                                          fuse_relu, vmem_limit)
    else:
        # Two-pass fallback: slab does not fit VMEM (e.g. 112x112 stem, N=32).
        mean_c, var_c = _stats_pass(x3, vmem_limit, block_target, itemsize)
        scale = weight.astype(jnp.float32) * lax.rsqrt(var_c + eps)
        shift = bias.astype(jnp.float32) - mean_c * scale
        out3 = _apply_pass(x3, scale, shift, fuse_relu, vmem_limit,
                           block_target, itemsize)

    out = out3.reshape(N, C, H, W)

    # Running-stat bookkeeping (C-length glue, plain JAX).
    if unbiased_running_var and M > 1:
        # torch.nn.BatchNorm2d semantics: running_var uses unbiased variance.
        var_for_running = var_c * (float(M) / float(M - 1))
    else:
        # Spec module semantics: biased variance feeds the running update.
        var_for_running = var_c
    new_running_mean = (1.0 - momentum) * running_mean + momentum * mean_c
    new_running_var = (1.0 - momentum) * running_var + momentum * var_for_running
    new_num_batches_tracked = num_batches_tracked + 1
    return out, new_running_mean, new_running_var, new_num_batches_tracked


if __name__ == "__main__":
    key = jax.random.PRNGKey(0)
    k_x, k_w, k_b = jax.random.split(key, 3)

    N, C, H, W = 2, 4, 16, 16
    eps, momentum = 1e-5, 0.1

    x = jax.random.normal(k_x, (N, C, H, W), dtype=jnp.float32)
    weight = 1.0 + 0.5 * jax.random.normal(k_w, (C,), dtype=jnp.float32)
    bias = 0.5 * jax.random.normal(k_b, (C,), dtype=jnp.float32)
    running_mean = jnp.zeros((C,), dtype=jnp.float32)
    running_var = jnp.ones((C,), dtype=jnp.float32)
    num_batches_tracked = jnp.array(0, dtype=jnp.int32)

    # Fused single-pass path (default for these shapes).
    out, rm, rv, nbt = batchnorm2d_forward(
        x, weight, bias, running_mean, running_var, num_batches_tracked,
        eps=eps, momentum=momentum)
    # Fused + ReLU epilogue (BN+ReLU pairs in ResNet34).
    out_relu, _, _, _ = batchnorm2d_forward(
        x, weight, bias, running_mean, running_var, num_batches_tracked,
        eps=eps, momentum=momentum, fuse_relu=True)
    # Forced two-pass fallback: exercises the stats + lane-dense apply kernels.
    out_tp, rm_tp, rv_tp, _ = batchnorm2d_forward(
        x, weight, bias, running_mean, running_var, num_batches_tracked,
        eps=eps, momentum=momentum, max_fused_block_bytes=0)
    jax.block_until_ready((out, rm, rv, nbt, out_relu, out_tp, rm_tp, rv_tp))

    # Pure-JAX reference matching the spec module (training branch).
    mean_ref = jnp.mean(x, axis=(0, 2, 3), keepdims=True)
    var_ref = jnp.var(x, axis=(0, 2, 3), keepdims=True)        # biased
    y_ref = ((x - mean_ref) / jnp.sqrt(var_ref + eps)
             * weight.reshape(1, C, 1, 1) + bias.reshape(1, C, 1, 1))
    rm_ref = (1 - momentum) * running_mean + momentum * mean_ref.reshape(C)
    rv_ref = (1 - momentum) * running_var + momentum * var_ref.reshape(C)

    checks = [
        (out, y_ref, "fused BN output"),
        (out_relu, jnp.maximum(y_ref, 0.0), "fused BN+ReLU output"),
        (out_tp, y_ref, "two-pass BN output"),
        (rm, rm_ref, "running_mean (fused)"),
        (rv, rv_ref, "running_var (fused)"),
        (rm_tp, rm_ref, "running_mean (two-pass)"),
        (rv_tp, rv_ref, "running_var (two-pass)"),
    ]
    for got, want, name in checks:
        if not jnp.allclose(got, want, atol=1e-5, rtol=1e-5):
            raise AssertionError(f"{name} mismatch vs reference")
    if int(nbt) != 1:
        raise AssertionError("num_batches_tracked mismatch")

    print("KERNEL_OK")
</pallas_src>

<mosaic_0001>
module attributes {stable_mosaic.version = 11 : i64} {
  func.func @_bn_fused_kernel(%arg0: i32, %arg1: memref<2x4x256xf32, #tpu.memory_space<vmem>>, %arg2: memref<1x4x1xf32, #tpu.memory_space<vmem>>, %arg3: memref<1x4x1xf32, #tpu.memory_space<vmem>>, %arg4: memref<2x4x256xf32, #tpu.memory_space<vmem>>, %arg5: memref<1x4x1xf32, #tpu.memory_space<vmem>>, %arg6: memref<1x4x1xf32, #tpu.memory_space<vmem>>) attributes {dimension_semantics = [#tpu.dimension_semantics<parallel>], iteration_bounds = array<i64: 1>, scalar_prefetch = 0 : i64, scratch_operands = 0 : i64, tpu.core_type = #tpu.core_type<tc>, window_params = [{transform_indices = @transform_0, window_bounds = array<i64: 2, 4, 256>}, {transform_indices = @transform_1, window_bounds = array<i64: 1, 4, 1>}, {transform_indices = @transform_2, window_bounds = array<i64: 1, 4, 1>}, {transform_indices = @transform_3, window_bounds = array<i64: 2, 4, 256>}, {transform_indices = @transform_4, window_bounds = array<i64: 1, 4, 1>}, {transform_indices = @transform_5, window_bounds = array<i64: 1, 4, 1>}]} {
    %c0 = arith.constant 0 : index
    %c0_0 = arith.constant 0 : index
    %c0_1 = arith.constant 0 : index
    %0 = vector.load %arg1[%c0, %c0_0, %c0_1] : memref<2x4x256xf32, #tpu.memory_space<vmem>>, vector<2x4x256xf32>
    %cst = arith.constant dense<0.000000e+00> : vector<2x4xf32>
    %1 = vector.multi_reduction <add>, %0, %cst [2] : vector<2x4x256xf32> to vector<2x4xf32>
    %2 = vector.shape_cast %1 : vector<2x4xf32> to vector<2x4x1xf32>
    %cst_2 = arith.constant dense<0.000000e+00> : vector<4x1xf32>
    %3 = vector.multi_reduction <add>, %2, %cst_2 [0] : vector<2x4x1xf32> to vector<4x1xf32>
    %4 = vector.shape_cast %3 : vector<4x1xf32> to vector<1x4x1xf32>
    %cst_3 = arith.constant 0.001953125 : f32
    %5 = vector.broadcast %cst_3 : f32 to vector<1x4x1xf32>
    %6 = arith.mulf %4, %5 : vector<1x4x1xf32>
    %7 = vector.broadcast %6 : vector<1x4x1xf32> to vector<2x4x256xf32>
    %8 = arith.subf %0, %7 : vector<2x4x256xf32>
    %9 = arith.mulf %8, %8 : vector<2x4x256xf32>
    %cst_4 = arith.constant dense<0.000000e+00> : vector<2x4xf32>
    %10 = vector.multi_reduction <add>, %9, %cst_4 [2] : vector<2x4x256xf32> to vector<2x4xf32>
    %11 = vector.shape_cast %10 : vector<2x4xf32> to vector<2x4x1xf32>
    %cst_5 = arith.constant dense<0.000000e+00> : vector<4x1xf32>
    %12 = vector.multi_reduction <add>, %11, %cst_5 [0] : vector<2x4x1xf32> to vector<4x1xf32>
    %13 = vector.shape_cast %12 : vector<4x1xf32> to vector<1x4x1xf32>
    %cst_6 = arith.constant 0.001953125 : f32
    %14 = vector.broadcast %cst_6 : f32 to vector<1x4x1xf32>
    %15 = arith.mulf %13, %14 : vector<1x4x1xf32>
    %c0_7 = arith.constant 0 : index
    %c0_8 = arith.constant 0 : index
    %c0_9 = arith.constant 0 : index
    %16 = vector.load %arg2[%c0_7, %c0_8, %c0_9] : memref<1x4x1xf32, #tpu.memory_space<vmem>>, vector<1x4x1xf32>
    %cst_10 = arith.constant 9.99999974E-6 : f32
    %17 = vector.broadcast %cst_10 : f32 to vector<1x4x1xf32>
    %18 = arith.addf %15, %17 : vector<1x4x1xf32>
    %19 = math.rsqrt %18 : vector<1x4x1xf32>
    %20 = arith.mulf %16, %19 : vector<1x4x1xf32>
    %21 = vector.broadcast %20 : vector<1x4x1xf32> to vector<2x4x256xf32>
    %22 = arith.mulf %8, %21 : vector<2x4x256xf32>
    %c0_11 = arith.constant 0 : index
    %c0_12 = arith.constant 0 : index
    %c0_13 = arith.constant 0 : index
    %23 = vector.load %arg3[%c0_11, %c0_12, %c0_13] : memref<1x4x1xf32, #tpu.memory_space<vmem>>, vector<1x4x1xf32>
    %24 = vector.broadcast %23 : vector<1x4x1xf32> to vector<2x4x256xf32>
    %25 = arith.addf %22, %24 : vector<2x4x256xf32>
    %c0_14 = arith.constant 0 : index
    %c0_15 = arith.constant 0 : index
    %c0_16 = arith.constant 0 : index
    %26 = vector.load %arg4[%c0_14, %c0_15, %c0_16] : memref<2x4x256xf32, #tpu.memory_space<vmem>>, vector<2x4x256xf32>
    tpu.vector_store %arg4[%c0_14, %c0_15, %c0_16], %25 {strides = array<i32>} : memref<2x4x256xf32, #tpu.memory_space<vmem>>, vector<2x4x256xf32>,
    %c0_17 = arith.constant 0 : index
    %c0_18 = arith.constant 0 : index
    %c0_19 = arith.constant 0 : index
    %27 = vector.load %arg5[%c0_17, %c0_18, %c0_19] : memref<1x4x1xf32, #tpu.memory_space<vmem>>, vector<1x4x1xf32>
    tpu.vector_store %arg5[%c0_17, %c0_18, %c0_19], %6 {strides = array<i32>} : memref<1x4x1xf32, #tpu.memory_space<vmem>>, vector<1x4x1xf32>,
    %c0_20 = arith.constant 0 : index
    %c0_21 = arith.constant 0 : index
    %c0_22 = arith.constant 0 : index
    %28 = vector.load %arg6[%c0_20, %c0_21, %c0_22] : memref<1x4x1xf32, #tpu.memory_space<vmem>>, vector<1x4x1xf32>
    tpu.vector_store %arg6[%c0_20, %c0_21, %c0_22], %15 {strides = array<i32>} : memref<1x4x1xf32, #tpu.memory_space<vmem>>, vector<1x4x1xf32>,
    return
  }
  func.func @transform_0(%arg0: i32) -> (i32, i32, i32) {
    %c0_i32 = arith.constant 0 : i32
    %c0_i32_0 = arith.constant 0 : i32
    %c0_i32_1 = arith.constant 0 : i32
    return %c0_i32, %arg0, %c0_i32_0 : i32, i32, i32
  }
  func.func @transform_1(%arg0: i32) -> (i32, i32, i32) {
    %c0_i32 = arith.constant 0 : i32
    %c0_i32_0 = arith.constant 0 : i32
    %c0_i32_1 = arith.constant 0 : i32
    return %c0_i32, %arg0, %c0_i32_0 : i32, i32, i32
  }
  func.func @transform_2(%arg0: i32) -> (i32, i32, i32) {
    %c0_i32 = arith.constant 0 : i32
    %c0_i32_0 = arith.constant 0 : i32
    %c0_i32_1 = arith.constant 0 : i32
    return %c0_i32, %arg0, %c0_i32_0 : i32, i32, i32
  }
  func.func @transform_3(%arg0: i32) -> (i32, i32, i32) {
    %c0_i32 = arith.constant 0 : i32
    %c0_i32_0 = arith.constant 0 : i32
    %c0_i32_1 = arith.constant 0 : i32
    return %c0_i32, %arg0, %c0_i32_0 : i32, i32, i32
  }
  func.func @transform_4(%arg0: i32) -> (i32, i32, i32) {
    %c0_i32 = arith.constant 0 : i32
    %c0_i32_0 = arith.constant 0 : i32
    %c0_i32_1 = arith.constant 0 : i32
    return %c0_i32, %arg0, %c0_i32_0 : i32, i32, i32
  }
  func.func @transform_5(%arg0: i32) -> (i32, i32, i32) {
    %c0_i32 = arith.constant 0 : i32
    %c0_i32_0 = arith.constant 0 : i32
    %c0_i32_1 = arith.constant 0 : i32
    return %c0_i32, %arg0, %c0_i32_0 : i32, i32, i32
  }
}

</mosaic_0001>

<llo_original>
// kernel: tpu_custom_call.1
$region0: #{tpu_custom_call.1}
  #allocation0 [shape = 'u32[]', space=smem, size = 0x4, offset = 0x4, fixed_abs, tag = 'smem constant byte address 0x4 - core index']
  #allocation1 [shape = 'u32[144,128]{1,0:T(1,128)}', space=vmem, size = 0x12000, scoped, tag = 'internal scratch']
  %s0 = inlined_call_operand.hbm [shape: f32[2,4,256], index: 0, kind: input, shape index: {}]
  %s1 = inlined_call_operand.vmem [shape: f32[1,4,1], index: 1, kind: input, shape index: {}]
  %s2 = inlined_call_operand.vmem [shape: f32[1,4,1], index: 2, kind: input, shape index: {}]
  %s3 = inlined_call_operand.hbm [shape: f32[2,4,256], index: 3, kind: output, shape index: {0}]
  %s4 = inlined_call_operand.vmem [shape: f32[1,4,1], index: 4, kind: output, shape index: {1}]
  %s5 = inlined_call_operand.vmem [shape: f32[1,4,1], index: 5, kind: output, shape index: {2}]
  %6 = xla_tuple %s3, %s4, %s5
  %s7 = sld [smem:[#allocation0]]
  $region42: #{tpu_custom_call.1} parent=0
    _
  %s9 = ssub.s32 1, %s7
  %s10 = scalar_select 0, %s9, %s7
  $region1: #{tpu_custom_call.1} parent=0
    #allocation2 [shape = 'u8[8192]{0}', space=vmem, size = 0x2000, scoped, tag = 'input window, operand 0, single buffered']
    #allocation3 [shape = 's32[1]{0}', space=sflag, size = 0x4, scoped, tag = 'scoped memory for tpu_custom_call.1']
    #allocation4 [shape = 's32[1]{0}', space=sflag, size = 0x4, scoped, tag = 'scoped memory for tpu_custom_call.1']
    #allocation5 [shape = 'u8[8192]{0}', space=vmem, size = 0x2000, scoped, tag = 'output window, operand 0, single buffered']
    %11 = vsyncpa [#allocation3], 0
    %12 = vsyncpa [#allocation4], 0
    // Predicated region
    $region2: #{tpu_custom_call.1} parent=1 // pred_check
      _
    $region3: #{tpu_custom_call.1} parent=1 // pred_check_branch
      %14 = sbr.rel (0) target = $region5
    $region4: #{tpu_custom_call.1} parent=1 // pred_region
      %s16 = ssub.s32 256, 256
      %17 = vsyncadd [#allocation3], %s16
      %s18 = sshll.u32 [#allocation2], 4
      %s19 = int_to_ptr.vmem [resolvable:$true] %s18
      %24 = dma.hbm_to_vmem [thread:$0]  %s0, 256, %s19, [#allocation3], 128, 128, 8
    $region5: #{tpu_custom_call.1} parent=1 // pred_fallthru
      _
    // Predicated region
    $region6: #{tpu_custom_call.1} parent=1 // pred_check
      _
    $region7: #{tpu_custom_call.1} parent=1 // pred_check_branch
      %26 = sbr.rel (0) target = $region9
    $region8: #{tpu_custom_call.1} parent=1 // pred_region
      _
    $region9: #{tpu_custom_call.1} parent=1 // pred_fallthru
      _
    // Predicated region
    $region10: #{tpu_custom_call.1} parent=1 // pred_check
      _
    $region11: #{tpu_custom_call.1} parent=1 // pred_check_branch
      %28 = sbr.rel (0) target = $region13
    $region12: #{tpu_custom_call.1} parent=1 // pred_region
      _
    $region13: #{tpu_custom_call.1} parent=1 // pred_fallthru
      _
    // Predicated region
    $region14: #{tpu_custom_call.1} parent=1 // pred_check
      _
    $region15: #{tpu_custom_call.1} parent=1 // pred_check_branch
      %30 = sbr.rel (0) target = $region17
    $region16: #{tpu_custom_call.1} parent=1 // pred_region
      %31 = dma.done [#allocation3], 256
    $region17: #{tpu_custom_call.1} parent=1 // pred_fallthru
      _
    %v32 = vld [vmem:[#allocation2] sm:$0xff]
    %v33 = vld [vmem:[#allocation2 + $0x8] sm:$0xff]
    %v36 = vcombine.high %v32, %v32
    %v37 = vcombine.high %v33, %v33
    %vm40 = vcmask 1043456
    %v41 = vsel %vm40, %v32, 0.0
    %v42 = vsel %vm40, %v36, 0.0
    %v43 = vadd.f32 %v41, %v42
    %44 = vadd.xlane.f32.xlu0 %v43
    %v45 = vpop.xlane.xlu0 %44
    %v46 = vsel %vm40, %v33, 0.0
    %v47 = vsel %vm40, %v37, 0.0
    %v48 = vadd.f32 %v46, %v47
    %49 = vadd.xlane.f32.xlu0 %v48
    %v50 = vpop.xlane.xlu0 %49
    %v51 = vsel %vm40, %v45, 0.0
    %v52 = vsel %vm40, %v50, 0.0
    %v53 = vadd.f32 %v51, %v52
    %v54 = vmul.f32 %v53, 0.001953125
    %v57 = vunpack.c.l.s4 839922192
    %v58 = vunpack.c.0.s8 %v57
    %v59 = vlaneseq
    %v60 = vshrl.u32 %v59, 7
    %v61 = vsub.s32 %v58, %v60
    %v62 = vrot.slane %v54, %v61
    %v64 = vsub.f32 %v32, %v62
    %v65 = vsub.f32 %v33, %v62
    %v66 = vmul.f32 %v64, %v64
    %v67 = vmul.f32 %v65, %v65
    %v70 = vcombine.high %v66, %v66
    %v71 = vcombine.high %v67, %v67
    %v74 = vsel %vm40, %v66, 0.0
    %v75 = vsel %vm40, %v70, 0.0
    %v76 = vadd.f32 %v74, %v75
    %77 = vadd.xlane.f32.xlu0 %v76
    %v78 = vpop.xlane.xlu0 %77
    %v79 = vsel %vm40, %v67, 0.0
    %v80 = vsel %vm40, %v71, 0.0
    %v81 = vadd.f32 %v79, %v80
    %82 = vadd.xlane.f32.xlu0 %v81
    %v83 = vpop.xlane.xlu0 %82
    %v84 = vsel %vm40, %v78, 0.0
    %v85 = vsel %vm40, %v83, 0.0
    %v86 = vadd.f32 %v84, %v85
    %v87 = vmul.f32 %v86, 0.001953125
    %v88 = vld [vmem:[%s1] sm:$0xf]
    %v89 = vadd.f32 %v87, 1e-05
    %v90 = vrsqrt.pop %v89
    %v91 = vmul.f32 %v88, %v90
    %93 = vset.pattern.permute.xlu0 0
    %94 = vperm.xlu0 %93, %v91
    %v95 = vpop.permute.xlu0 %94
    %v97 = vunpack.c.l.s4 839922192
    %v98 = vunpack.c.0.s8 %v97
    %v99 = vlaneseq
    %v100 = vshrl.u32 %v99, 7
    %v101 = vsub.s32 %v98, %v100
    %v102 = vrot.slane %v95, %v101
    %v104 = vmul.f32 %v64, %v102
    %v105 = vmul.f32 %v65, %v102
    %v106 = vld [vmem:[%s2] sm:$0xf]
    %108 = vset.pattern.permute.xlu0 0
    %109 = vperm.xlu0 %108, %v106
    %v110 = vpop.permute.xlu0 %109
    %v112 = vunpack.c.l.s4 839922192
    %v113 = vunpack.c.0.s8 %v112
    %v114 = vlaneseq
    %v115 = vshrl.u32 %v114, 7
    %v116 = vsub.s32 %v113, %v115
    %v117 = vrot.slane %v110, %v116
    %v119 = vadd.f32 %v104, %v117
    %v120 = vadd.f32 %v105, %v117
    %121 = vst [vmem:[#allocation5] sm:$0xff] %v119
    %122 = vst [vmem:[#allocation5 + $0x8] sm:$0xff] %v120
    %vm123 = vcmask 3072
    %124 = vst.msk [vmem:[%s4] sm:$0xf] %vm123, %v54
    %125 = vst.msk [vmem:[%s5] sm:$0xf] %vm123, %v87
    // Predicated region
    $region18: #{tpu_custom_call.1} parent=1 // pred_check
      _
    $region19: #{tpu_custom_call.1} parent=1 // pred_check_branch
      %127 = sbr.rel (0) target = $region21
    $region20: #{tpu_custom_call.1} parent=1 // pred_region
      %s129 = ssub.s32 256, 256
      %130 = vsyncadd [#allocation4], %s129
      %s131 = sshll.u32 [#allocation5], 4
      %s132 = int_to_ptr.vmem [resolvable:$true] %s131
      %137 = dma.vmem_to_hbm [thread:$0]  %s132, 256, %s3, [#allocation4], 128, 128, 8
    $region21: #{tpu_custom_call.1} parent=1 // pred_fallthru
      _
    // Predicated region
    $region22: #{tpu_custom_call.1} parent=1 // pred_check
      _
    $region23: #{tpu_custom_call.1} parent=1 // pred_check_branch
      %139 = sbr.rel (0) target = $region25
    $region24: #{tpu_custom_call.1} parent=1 // pred_region
      _
    $region25: #{tpu_custom_call.1} parent=1 // pred_fallthru
      _
    // Predicated region
    $region26: #{tpu_custom_call.1} parent=1 // pred_check
      _
    $region27: #{tpu_custom_call.1} parent=1 // pred_check_branch
      %141 = sbr.rel (0) target = $region29
    $region28: #{tpu_custom_call.1} parent=1 // pred_region
      _
    $region29: #{tpu_custom_call.1} parent=1 // pred_fallthru
      _
    // Predicated region
    $region30: #{tpu_custom_call.1} parent=1 // pred_check
      _
    $region31: #{tpu_custom_call.1} parent=1 // pred_check_branch
      %143 = sbr.rel (0) target = $region33
    $region32: #{tpu_custom_call.1} parent=1 // pred_region
      %144 = dma.done [#allocation4], 256
    $region33: #{tpu_custom_call.1} parent=1 // pred_fallthru
      _
    // Predicated region
    $region34: #{tpu_custom_call.1} parent=1 // pred_check
      _
    $region35: #{tpu_custom_call.1} parent=1 // pred_check_branch
      %146 = sbr.rel (0) target = $region37
    $region36: #{tpu_custom_call.1} parent=1 // pred_region
      _
    $region37: #{tpu_custom_call.1} parent=1 // pred_fallthru
      _
    // Predicated region
    $region38: #{tpu_custom_call.1} parent=1 // pred_check
      _
    $region39: #{tpu_custom_call.1} parent=1 // pred_check_branch
      %148 = sbr.rel (0) target = $region41
    $region40: #{tpu_custom_call.1} parent=1 // pred_region
      _
    $region41: #{tpu_custom_call.1} parent=1 // pred_fallthru
      _
    %149 = vsyncpa [#allocation3], 1
    %150 = vsyncpa [#allocation4], 1

</llo_original>
